<compile_context>
chip_gen: v5e
topology: v5e:2x2
jax: 0.10.0
libtpu: 0.0.40
codegen_flags: <defaults>
</compile_context>

<pallas_src>
import functools

import jax
import jax.numpy as jnp
from jax import lax
from jax.experimental import pallas as pl
from jax.experimental.pallas import tpu as pltpu


# ----------------------------------------------------------------------------
# helpers
# ----------------------------------------------------------------------------
def _round_up(x, m):
    return (x + m - 1) // m * m


def _largest_tile(n, cap, step):
    """Largest multiple of `step` that is <= min(n, cap) and divides n."""
    t = max((min(n, cap) // step) * step, step)
    while n % t:
        t -= step
    return t


def _pad_gate_cols(w, H, Hp):
    """Pad a (rows, 4H) gate-ordered [i,f,g,o] matrix to (rows, 4*Hp)."""
    rows = w.shape[0]
    w4 = w.reshape(rows, 4, H)
    w4 = jnp.pad(w4, ((0, 0), (0, 0), (0, Hp - H)))
    return w4.reshape(rows, 4 * Hp)


# ----------------------------------------------------------------------------
# Phase 1 & 3: tiled matmul + bias (+ optional sigmoid) kernel
# ----------------------------------------------------------------------------
def _matmul_bias_act_kernel(x_ref, w_ref, b_ref, o_ref, *, apply_sigmoid):
    y = jnp.dot(x_ref[...], w_ref[...], preferred_element_type=jnp.float32)
    y = y + b_ref[...]
    if apply_sigmoid:
        y = jax.nn.sigmoid(y)
    o_ref[...] = y.astype(o_ref.dtype)


def _matmul_bias_act(x, w, b, *, apply_sigmoid, tm_cap=256, tn_cap=512):
    """out = act(x @ w + b); x:(M,K), w:(K,N), b:(1,N). N must be mult of 128."""
    M, K = x.shape
    N = w.shape[1]
    tm = min(tm_cap, _round_up(M, 8))
    Mp = _round_up(M, tm)
    tn = _largest_tile(N, tn_cap, 128)
    if Mp != M:
        x = jnp.pad(x, ((0, Mp - M), (0, 0)))

    kernel = functools.partial(_matmul_bias_act_kernel,
                               apply_sigmoid=apply_sigmoid)
    out = pl.pallas_call(
        kernel,
        out_shape=jax.ShapeDtypeStruct((Mp, N), jnp.float32),
        grid=(Mp // tm, N // tn),
        in_specs=[
            pl.BlockSpec((tm, K), lambda i, j: (i, 0)),
            pl.BlockSpec((K, tn), lambda i, j: (0, j)),
            pl.BlockSpec((1, tn), lambda i, j: (0, j)),
        ],
        out_specs=pl.BlockSpec((tm, tn), lambda i, j: (i, j)),
        compiler_params=pltpu.CompilerParams(
            dimension_semantics=("parallel", "parallel")),
    )(x, w, b)
    return out[:M]


# ----------------------------------------------------------------------------
# Phase 2: LSTM recurrence (input projection already folded into gates_in)
# ----------------------------------------------------------------------------
def _lstm_recurrence_kernel(gin_ref, w_hh_ref, hs_ref, h_sc, c_sc):
    """gin_ref: (Tc, Bt, 4Hp)  pre-computed x@W_ih + bias for this tile
       w_hh_ref: (Hp, 4Hp)
       hs_ref:  (Tc, Bt, Hp)   hidden state per timestep (output)
       h_sc/c_sc: (Bt, Hp)     state carried across time chunks via scratch."""
    Hp = h_sc.shape[1]

    @pl.when(pl.program_id(1) == 0)
    def _():
        h_sc[...] = jnp.zeros_like(h_sc)
        c_sc[...] = jnp.zeros_like(c_sc)

    def step(t, carry):
        h = h_sc[...]
        c = c_sc[...]
        gates = gin_ref[t] + jnp.dot(h, w_hh_ref[...],
                                     preferred_element_type=jnp.float32)
        # PyTorch gate order: i, f, g, o — each slice is 128-lane aligned.
        i_g = jax.nn.sigmoid(gates[:, 0 * Hp:1 * Hp])
        f_g = jax.nn.sigmoid(gates[:, 1 * Hp:2 * Hp])
        g_g = jnp.tanh(gates[:, 2 * Hp:3 * Hp])
        o_g = jax.nn.sigmoid(gates[:, 3 * Hp:4 * Hp])
        c_new = f_g * c + i_g * g_g
        h_new = o_g * jnp.tanh(c_new)
        c_sc[...] = c_new
        h_sc[...] = h_new
        hs_ref[t] = h_new
        return carry

    lax.fori_loop(0, gin_ref.shape[0], step, 0, unroll=2)


# ----------------------------------------------------------------------------
# Full forward pass
# ----------------------------------------------------------------------------
def dkt_forward(questions, responses, times_spent, params):
    """Matches DKTModel.forward in eval mode. Returns (B, T, num_q)."""
    num_q = params["num_q"]
    emb_table = params["emb_table"]        # (2*num_q + 1, E)
    w_time = params["w_time"]              # (E, 1)
    b_time = params["b_time"]              # (E,)
    w_ih = params["w_ih"]                  # (4H, E)
    w_hh = params["w_hh"]                  # (4H, H)
    b_ih = params["b_ih"]                  # (4H,)
    b_hh = params["b_hh"]                  # (4H,)
    w_fc = params["w_fc"]                  # (num_q, H)
    b_fc = params["b_fc"]                  # (num_q,)

    B, T = questions.shape
    E = emb_table.shape[1]
    H = w_hh.shape[1]
    Q = w_fc.shape[0]

    # ---- padded / tiled sizes -------------------------------------------
    Hp = _round_up(H, 128)                 # lane-aligned gate slices
    Qp = _round_up(Q, 128)                 # lane-dense FC output stores
    if B > 128:
        B_tile = 128
        Bp = _round_up(B, B_tile)
    else:
        Bp = _round_up(B, 8)               # f32 sublane multiple
        B_tile = Bp
    T_chunk = min(T, 8)
    Tp = _round_up(T, T_chunk)

    # ---- glue in plain JAX: embeddings + time linear ---------------------
    interactions = questions + num_q * responses
    emb = emb_table[interactions]                                   # (B, T, E)
    time_emb = times_spent[..., None] * w_time.reshape(1, 1, E) + b_time
    x = (emb + time_emb).astype(jnp.float32)                        # (B, T, E)

    # time-major + padding
    x_tm = jnp.transpose(x, (1, 0, 2))                              # (T, B, E)
    x_tm = jnp.pad(x_tm, ((0, Tp - T), (0, Bp - B), (0, 0)))        # (Tp, Bp, E)

    # ---- re-layout weights (gate-padded, lane-aligned) -------------------
    w_ih_p = _pad_gate_cols(w_ih.T, H, Hp)                          # (E, 4Hp)
    b_gates = (b_ih + b_hh).reshape(4, H)
    b_gates_p = jnp.pad(b_gates, ((0, 0), (0, Hp - H))).reshape(1, 4 * Hp)
    w_hh_p = jnp.pad(_pad_gate_cols(w_hh.T, H, Hp),
                     ((0, Hp - H), (0, 0)))                         # (Hp, 4Hp)
    w_fc_p = jnp.pad(w_fc.T, ((0, Hp - H), (0, Qp - Q)))            # (Hp, Qp)
    b_fc_p = jnp.pad(b_fc.reshape(1, Q), ((0, 0), (0, Qp - Q)))     # (1, Qp)

    # ---- phase 1: input projection (one big MXU matmul, out of the loop) --
    gates_in = _matmul_bias_act(x_tm.reshape(Tp * Bp, E), w_ih_p, b_gates_p,
                                apply_sigmoid=False)
    gates_in = gates_in.reshape(Tp, Bp, 4 * Hp)

    # ---- phase 2: LSTM recurrence (pipelined over time chunks) -----------
    hs = pl.pallas_call(
        _lstm_recurrence_kernel,
        out_shape=jax.ShapeDtypeStruct((Tp, Bp, Hp), jnp.float32),
        grid=(Bp // B_tile, Tp // T_chunk),
        in_specs=[
            pl.BlockSpec((T_chunk, B_tile, 4 * Hp), lambda b, t: (t, b, 0)),
            pl.BlockSpec((Hp, 4 * Hp), lambda b, t: (0, 0)),
        ],
        out_specs=pl.BlockSpec((T_chunk, B_tile, Hp), lambda b, t: (t, b, 0)),
        scratch_shapes=[
            pltpu.VMEM((B_tile, Hp), jnp.float32),   # h
            pltpu.VMEM((B_tile, Hp), jnp.float32),   # c
        ],
        compiler_params=pltpu.CompilerParams(
            dimension_semantics=("parallel", "arbitrary")),
    )(gates_in, w_hh_p)

    # ---- phase 3: FC + sigmoid (batched, lane-dense output) --------------
    probs = _matmul_bias_act(hs.reshape(Tp * Bp, Hp), w_fc_p, b_fc_p,
                             apply_sigmoid=True)
    probs = probs.reshape(Tp, Bp, Qp)[:T, :B, :Q]                   # (T, B, Q)

    # TODO(synk): Dropout(0.5) is identity in eval mode; training-mode random
    # masking is not implemented here.
    return jnp.transpose(probs, (1, 0, 2))                          # (B, T, Q)


# ----------------------------------------------------------------------------
# pure-jnp reference (mirrors torch semantics)
# ----------------------------------------------------------------------------
def _reference_forward(questions, responses, times_spent, params):
    num_q = params["num_q"]
    E = params["emb_table"].shape[1]
    H = params["w_hh"].shape[1]
    interactions = questions + num_q * responses
    emb = params["emb_table"][interactions]
    time_emb = (times_spent[..., None] * params["w_time"].reshape(1, 1, E)
                + params["b_time"])
    x = emb + time_emb
    B, T, _ = x.shape
    h = jnp.zeros((B, H), jnp.float32)
    c = jnp.zeros((B, H), jnp.float32)
    outs = []
    for t in range(T):
        gates = (x[:, t, :] @ params["w_ih"].T + params["b_ih"]
                 + h @ params["w_hh"].T + params["b_hh"])
        i_g = jax.nn.sigmoid(gates[:, 0 * H:1 * H])
        f_g = jax.nn.sigmoid(gates[:, 1 * H:2 * H])
        g_g = jnp.tanh(gates[:, 2 * H:3 * H])
        o_g = jax.nn.sigmoid(gates[:, 3 * H:4 * H])
        c = f_g * c + i_g * g_g
        h = o_g * jnp.tanh(c)
        outs.append(jax.nn.sigmoid(h @ params["w_fc"].T + params["b_fc"]))
    return jnp.stack(outs, axis=1)


def make_params(key, num_q, emb_size, hidden_size):
    ks = jax.random.split(key, 8)
    s = 0.1
    return {
        "num_q": num_q,
        "emb_table": s * jax.random.normal(ks[0], (num_q * 2 + 1, emb_size), jnp.float32),
        "w_time": s * jax.random.normal(ks[1], (emb_size, 1), jnp.float32),
        "b_time": s * jax.random.normal(ks[2], (emb_size,), jnp.float32),
        "w_ih": s * jax.random.normal(ks[3], (4 * hidden_size, emb_size), jnp.float32),
        "w_hh": s * jax.random.normal(ks[4], (4 * hidden_size, hidden_size), jnp.float32),
        "b_ih": s * jax.random.normal(ks[5], (4 * hidden_size,), jnp.float32),
        "b_hh": s * jax.random.normal(ks[6], (4 * hidden_size,), jnp.float32),
        "w_fc": s * jax.random.normal(ks[7], (num_q, hidden_size), jnp.float32),
        "b_fc": jnp.zeros((num_q,), jnp.float32),
    }


if __name__ == "__main__":
    num_q, emb_size, hidden_size = 16, 32, 32
    B, T = 2, 8

    key = jax.random.PRNGKey(0)
    kp, kq, kr, kt = jax.random.split(key, 4)
    params = make_params(kp, num_q, emb_size, hidden_size)

    questions = jax.random.randint(kq, (B, T), 0, num_q, dtype=jnp.int32)
    responses = jax.random.randint(kr, (B, T), 0, 2, dtype=jnp.int32)
    times_spent = jax.random.uniform(kt, (B, T), jnp.float32)

    y = dkt_forward(questions, responses, times_spent, params)
    y = jax.block_until_ready(y)

    y_ref = _reference_forward(questions, responses, times_spent, params)
    assert y.shape == (B, T, num_q)
    assert jnp.allclose(y, y_ref, atol=1e-4, rtol=1e-4), "mismatch vs reference"

    print("KERNEL_OK")
</pallas_src>

<mosaic_0001>
module attributes {stable_mosaic.version = 11 : i64} {
  func.func @_matmul_bias_act_kernel(%arg0: i32, %arg1: i32, %arg2: memref<64x32xf32, #tpu.memory_space<vmem>>, %arg3: memref<32x512xf32, #tpu.memory_space<vmem>>, %arg4: memref<1x512xf32, #tpu.memory_space<vmem>>, %arg5: memref<64x512xf32, #tpu.memory_space<vmem>>) attributes {dimension_semantics = [#tpu.dimension_semantics<parallel>, #tpu.dimension_semantics<parallel>], iteration_bounds = array<i64: 1, 1>, scalar_prefetch = 0 : i64, scratch_operands = 0 : i64, tpu.core_type = #tpu.core_type<tc>, window_params = [{transform_indices = @transform_0, window_bounds = array<i64: 64, 32>}, {transform_indices = @transform_1, window_bounds = array<i64: 32, 512>}, {transform_indices = @transform_2, window_bounds = array<i64: 1, 512>}, {transform_indices = @transform_3, window_bounds = array<i64: 64, 512>}]} {
    %c0 = arith.constant 0 : index
    %c0_0 = arith.constant 0 : index
    %0 = vector.load %arg2[%c0, %c0_0] : memref<64x32xf32, #tpu.memory_space<vmem>>, vector<64x32xf32>
    %c0_1 = arith.constant 0 : index
    %c0_2 = arith.constant 0 : index
    %1 = vector.load %arg3[%c0_1, %c0_2] : memref<32x512xf32, #tpu.memory_space<vmem>>, vector<32x512xf32>
    %cst = arith.constant dense<0.000000e+00> : vector<64x512xf32>
    %2 = tpu.matmul %0, %1, %cst {dimension_numbers = #tpu.dot_dimension_numbers<[1], [0], [0], [1], [0, 0, 1, 1], [], []>} : vector<64x32xf32>, vector<32x512xf32>, vector<64x512xf32> -> vector<64x512xf32>
    %c0_3 = arith.constant 0 : index
    %c0_4 = arith.constant 0 : index
    %3 = vector.load %arg4[%c0_3, %c0_4] : memref<1x512xf32, #tpu.memory_space<vmem>>, vector<1x512xf32>
    %4 = vector.broadcast %3 : vector<1x512xf32> to vector<64x512xf32>
    %5 = arith.addf %2, %4 : vector<64x512xf32>
    %c0_5 = arith.constant 0 : index
    %c0_6 = arith.constant 0 : index
    %6 = vector.load %arg5[%c0_5, %c0_6] : memref<64x512xf32, #tpu.memory_space<vmem>>, vector<64x512xf32>
    tpu.vector_store %arg5[%c0_5, %c0_6], %5 {strides = array<i32>} : memref<64x512xf32, #tpu.memory_space<vmem>>, vector<64x512xf32>,
    return
  }
  func.func @transform_0(%arg0: i32, %arg1: i32) -> (i32, i32) {
    %c0_i32 = arith.constant 0 : i32
    %c0_i32_0 = arith.constant 0 : i32
    return %arg0, %c0_i32 : i32, i32
  }
  func.func @transform_1(%arg0: i32, %arg1: i32) -> (i32, i32) {
    %c0_i32 = arith.constant 0 : i32
    %c0_i32_0 = arith.constant 0 : i32
    return %c0_i32, %arg1 : i32, i32
  }
  func.func @transform_2(%arg0: i32, %arg1: i32) -> (i32, i32) {
    %c0_i32 = arith.constant 0 : i32
    %c0_i32_0 = arith.constant 0 : i32
    return %c0_i32, %arg1 : i32, i32
  }
  func.func @transform_3(%arg0: i32, %arg1: i32) -> (i32, i32) {
    %c0_i32 = arith.constant 0 : i32
    return %arg0, %arg1 : i32, i32
  }
}

</mosaic_0001>

<llo_original>
// kernel: tpu_custom_call.1
$region0: #{tpu_custom_call.1}
  #allocation0 [shape = 'u32[]', space=smem, size = 0x4, offset = 0x4, fixed_abs, tag = 'smem constant byte address 0x4 - core index']
  #allocation1 [shape = 'u32[72,128]{1,0:T(1,128)}', space=vmem, size = 0x9000, scoped, tag = 'internal scratch']
  %s0 = inlined_call_operand.vmem [shape: f32[64,32], index: 0, kind: input, shape index: {}]
  %s1 = inlined_call_operand.hbm [shape: f32[32,512], index: 1, kind: input, shape index: {}]
  %s2 = inlined_call_operand.vmem [shape: f32[1,512], index: 2, kind: input, shape index: {}]
  %s3 = inlined_call_operand.hbm [shape: f32[64,512], index: 3, kind: output, shape index: {}]
  %s4 = sld [smem:[#allocation0]]
  $region26: #{tpu_custom_call.1} parent=0
    _
  %s6 = ssub.s32 1, %s4
  %s7 = scalar_select 0, %s6, %s4
  $region1: #{tpu_custom_call.1} parent=0
    #allocation2 [shape = 'u8[65536]{0}', space=vmem, size = 0x10000, scoped, tag = 'input window, operand 1, single buffered']
    #allocation3 [shape = 's32[1]{0}', space=sflag, size = 0x4, scoped, tag = 'scoped memory for tpu_custom_call.1']
    #allocation4 [shape = 's32[1]{0}', space=sflag, size = 0x4, scoped, tag = 'scoped memory for tpu_custom_call.1']
    #allocation5 [shape = 'u8[131072]{0}', space=vmem, size = 0x20000, scoped, tag = 'output window, operand 0, single buffered']
    %8 = vsyncpa [#allocation3], 0
    %9 = vsyncpa [#allocation4], 0
    // Predicated region
    $region2: #{tpu_custom_call.1} parent=1 // pred_check
      _
    $region3: #{tpu_custom_call.1} parent=1 // pred_check_branch
      %11 = sbr.rel (0) target = $region5
    $region4: #{tpu_custom_call.1} parent=1 // pred_region
      _
    $region5: #{tpu_custom_call.1} parent=1 // pred_fallthru
      _
    // Predicated region
    $region6: #{tpu_custom_call.1} parent=1 // pred_check
      _
    $region7: #{tpu_custom_call.1} parent=1 // pred_check_branch
      %13 = sbr.rel (0) target = $region9
    $region8: #{tpu_custom_call.1} parent=1 // pred_region
      %15 = vsyncadd [#allocation3], 0
      %s16 = sshll.u32 %s1, 4
      %s17 = int_to_ptr.hbm [resolvable:$true] %s16
      %s18 = sshll.u32 [#allocation2], 4
      %s19 = int_to_ptr.vmem [resolvable:$true] %s18
      %24 = dma.hbm_to_vmem [thread:$0]  %s17, 2048, %s19, [#allocation3], 512, 512, 32
    $region9: #{tpu_custom_call.1} parent=1 // pred_fallthru
      _
    // Predicated region
    $region10: #{tpu_custom_call.1} parent=1 // pred_check
      _
    $region11: #{tpu_custom_call.1} parent=1 // pred_check_branch
      %26 = sbr.rel (0) target = $region13
    $region12: #{tpu_custom_call.1} parent=1 // pred_region
      _
    $region13: #{tpu_custom_call.1} parent=1 // pred_fallthru
      _
    // Predicated region
    $region14: #{tpu_custom_call.1} parent=1 // pred_check
      _
    $region15: #{tpu_custom_call.1} parent=1 // pred_check_branch
      %28 = sbr.rel (0) target = $region17
    $region16: #{tpu_custom_call.1} parent=1 // pred_region
      %30 = dma.done [#allocation3], 2048
    $region17: #{tpu_custom_call.1} parent=1 // pred_fallthru
      _
    %v31 = vld [vmem:[%s0] sm:$0xff]
    %v32 = vld [vmem:[%s0 + $0x8] sm:$0xff]
    %v33 = vld [vmem:[%s0 + $0x10] sm:$0xff]
    %v34 = vld [vmem:[%s0 + $0x18] sm:$0xff]
    %v35 = vld [vmem:[%s0 + $0x20] sm:$0xff]
    %v36 = vld [vmem:[%s0 + $0x28] sm:$0xff]
    %v37 = vld [vmem:[%s0 + $0x30] sm:$0xff]
    %v38 = vld [vmem:[%s0 + $0x38] sm:$0xff]
    %v39 = vld [vmem:[#allocation2] sm:$0xff]
    %v40 = vld [vmem:[#allocation2 + $0x8] sm:$0xff]
    %v41 = vld [vmem:[#allocation2 + $0x10] sm:$0xff]
    %v42 = vld [vmem:[#allocation2 + $0x18] sm:$0xff]
    %v43 = vld [vmem:[#allocation2 + $0x20] sm:$0xff]
    %v44 = vld [vmem:[#allocation2 + $0x28] sm:$0xff]
    %v45 = vld [vmem:[#allocation2 + $0x30] sm:$0xff]
    %v46 = vld [vmem:[#allocation2 + $0x38] sm:$0xff]
    %v47 = vld [vmem:[#allocation2 + $0x40] sm:$0xff]
    %v48 = vld [vmem:[#allocation2 + $0x48] sm:$0xff]
    %v49 = vld [vmem:[#allocation2 + $0x50] sm:$0xff]
    %v50 = vld [vmem:[#allocation2 + $0x58] sm:$0xff]
    %v51 = vld [vmem:[#allocation2 + $0x60] sm:$0xff]
    %v52 = vld [vmem:[#allocation2 + $0x68] sm:$0xff]
    %v53 = vld [vmem:[#allocation2 + $0x70] sm:$0xff]
    %v54 = vld [vmem:[#allocation2 + $0x78] sm:$0xff]
    %v55 = vld [vmem:[%s2] sm:$0xf]
    %v57 = vperm.slane %v55, 0
    %v58 = vperm.slane %v55, 1
    %v59 = vperm.slane %v55, 2
    %v60 = vperm.slane %v55, 3
    %vm65 = vcmask 261120
    %v67 = vsel %vm65, %v31, 0
    %v70 = vsel %vm65, %v32, 0
    %v73 = vsel %vm65, %v33, 0
    %v76 = vsel %vm65, %v34, 0
    %v79 = vsel %vm65, %v35, 0
    %v82 = vsel %vm65, %v36, 0
    %v85 = vsel %vm65, %v37, 0
    %v88 = vsel %vm65, %v38, 0
    %90 = vmatpush.msra.mxu0 0.0
    %91 = vmatpush.msra.mxu0 0.0
    %92 = vmatpush.msra.mxu0 0.0
    %93 = vmatpush.msra.mxu0 0.0
    %94 = vmatpush.msra.mxu0 0.0
    %95 = vmatpush.msra.mxu0 0.0
    %96 = vmatpush.msra.mxu0 0.0
    %97 = vmatpush.msra.mxu0 0.0
    %98 = vmatpush.msra.mxu0 0.0
    %99 = vmatpush.msra.mxu0 0.0
    %100 = vmatpush.msra.mxu0 0.0
    %101 = vmatpush.msra.mxu0 0.0
    %102 = vmatpush.msra.mxu0 %v51
    %103 = vmatpush.msra.mxu0 %v47
    %104 = vmatpush.msra.mxu0 %v43
    %105 = vmatpush.msra.mxu0 %v39
    %106 = vmatmul.f32.gmra.mxu0 %v67
    %v107 = vpop.f32.mrf.mxu0
    %v108 = vadd.f32 %v57, %v107
    %109 = vmatmul.f32.gmra.mxu0 %v70
    %v110 = vpop.f32.mrf.mxu0
    %v111 = vadd.f32 %v57, %v110
    %112 = vmatmul.f32.gmra.mxu0 %v73
    %v113 = vpop.f32.mrf.mxu0
    %v114 = vadd.f32 %v57, %v113
    %115 = vmatmul.f32.gmra.mxu0 %v76
    %v116 = vpop.f32.mrf.mxu0
    %v117 = vadd.f32 %v57, %v116
    %118 = vmatmul.f32.gmra.mxu0 %v79
    %v119 = vpop.f32.mrf.mxu0
    %v120 = vadd.f32 %v57, %v119
    %121 = vmatmul.f32.gmra.mxu0 %v82
    %v122 = vpop.f32.mrf.mxu0
    %v123 = vadd.f32 %v57, %v122
    %124 = vmatmul.f32.gmra.mxu0 %v85
    %v125 = vpop.f32.mrf.mxu0
    %v126 = vadd.f32 %v57, %v125
    %127 = vmatmul.f32.gmra.mxu0 %v88
    %v128 = vpop.f32.mrf.mxu0
    %v129 = vadd.f32 %v57, %v128
    %130 = vdwg.mxu0
    %131 = vmatpush.msra.mxu0 0.0
    %132 = vmatpush.msra.mxu0 0.0
    %133 = vmatpush.msra.mxu0 0.0
    %134 = vmatpush.msra.mxu0 0.0
    %135 = vmatpush.msra.mxu0 0.0
    %136 = vmatpush.msra.mxu0 0.0
    %137 = vmatpush.msra.mxu0 0.0
    %138 = vmatpush.msra.mxu0 0.0
    %139 = vmatpush.msra.mxu0 0.0
    %140 = vmatpush.msra.mxu0 0.0
    %141 = vmatpush.msra.mxu0 0.0
    %142 = vmatpush.msra.mxu0 0.0
    %143 = vmatpush.msra.mxu0 %v52
    %144 = vmatpush.msra.mxu0 %v48
    %145 = vmatpush.msra.mxu0 %v44
    %146 = vmatpush.msra.mxu0 %v40
    %147 = vmatmul.f32.gmra.mxu0 %v67
    %v148 = vpop.f32.mrf.mxu0
    %v149 = vadd.f32 %v58, %v148
    %150 = vmatmul.f32.gmra.mxu0 %v70
    %v151 = vpop.f32.mrf.mxu0
    %v152 = vadd.f32 %v58, %v151
    %153 = vmatmul.f32.gmra.mxu0 %v73
    %v154 = vpop.f32.mrf.mxu0
    %v155 = vadd.f32 %v58, %v154
    %156 = vmatmul.f32.gmra.mxu0 %v76
    %v157 = vpop.f32.mrf.mxu0
    %v158 = vadd.f32 %v58, %v157
    %159 = vmatmul.f32.gmra.mxu0 %v79
    %v160 = vpop.f32.mrf.mxu0
    %v161 = vadd.f32 %v58, %v160
    %162 = vmatmul.f32.gmra.mxu0 %v82
    %v163 = vpop.f32.mrf.mxu0
    %v164 = vadd.f32 %v58, %v163
    %165 = vmatmul.f32.gmra.mxu0 %v85
    %v166 = vpop.f32.mrf.mxu0
    %v167 = vadd.f32 %v58, %v166
    %168 = vmatmul.f32.gmra.mxu0 %v88
    %v169 = vpop.f32.mrf.mxu0
    %v170 = vadd.f32 %v58, %v169
    %171 = vdwg.mxu0
    %172 = vmatpush.msra.mxu0 0.0
    %173 = vmatpush.msra.mxu0 0.0
    %174 = vmatpush.msra.mxu0 0.0
    %175 = vmatpush.msra.mxu0 0.0
    %176 = vmatpush.msra.mxu0 0.0
    %177 = vmatpush.msra.mxu0 0.0
    %178 = vmatpush.msra.mxu0 0.0
    %179 = vmatpush.msra.mxu0 0.0
    %180 = vmatpush.msra.mxu0 0.0
    %181 = vmatpush.msra.mxu0 0.0
    %182 = vmatpush.msra.mxu0 0.0
    %183 = vmatpush.msra.mxu0 0.0
    %184 = vmatpush.msra.mxu0 %v53
    %185 = vmatpush.msra.mxu0 %v49
    %186 = vmatpush.msra.mxu0 %v45
    %187 = vmatpush.msra.mxu0 %v41
    %188 = vmatmul.f32.gmra.mxu0 %v67
    %v189 = vpop.f32.mrf.mxu0
    %v190 = vadd.f32 %v59, %v189
    %191 = vmatmul.f32.gmra.mxu0 %v70
    %v192 = vpop.f32.mrf.mxu0
    %v193 = vadd.f32 %v59, %v192
    %194 = vmatmul.f32.gmra.mxu0 %v73
    %v195 = vpop.f32.mrf.mxu0
    %v196 = vadd.f32 %v59, %v195
    %197 = vmatmul.f32.gmra.mxu0 %v76
    %v198 = vpop.f32.mrf.mxu0
    %v199 = vadd.f32 %v59, %v198
    %200 = vmatmul.f32.gmra.mxu0 %v79
    %v201 = vpop.f32.mrf.mxu0
    %v202 = vadd.f32 %v59, %v201
    %203 = vmatmul.f32.gmra.mxu0 %v82
    %v204 = vpop.f32.mrf.mxu0
    %v205 = vadd.f32 %v59, %v204
    %206 = vmatmul.f32.gmra.mxu0 %v85
    %v207 = vpop.f32.mrf.mxu0
    %v208 = vadd.f32 %v59, %v207
    %209 = vmatmul.f32.gmra.mxu0 %v88
    %v210 = vpop.f32.mrf.mxu0
    %v211 = vadd.f32 %v59, %v210
    %212 = vdwg.mxu0
    %213 = vmatpush.msra.mxu0 0.0
    %214 = vmatpush.msra.mxu0 0.0
    %215 = vmatpush.msra.mxu0 0.0
    %216 = vmatpush.msra.mxu0 0.0
    %217 = vmatpush.msra.mxu0 0.0
    %218 = vmatpush.msra.mxu0 0.0
    %219 = vmatpush.msra.mxu0 0.0
    %220 = vmatpush.msra.mxu0 0.0
    %221 = vmatpush.msra.mxu0 0.0
    %222 = vmatpush.msra.mxu0 0.0
    %223 = vmatpush.msra.mxu0 0.0
    %224 = vmatpush.msra.mxu0 0.0
    %225 = vmatpush.msra.mxu0 %v54
    %226 = vmatpush.msra.mxu0 %v50
    %227 = vmatpush.msra.mxu0 %v46
    %228 = vmatpush.msra.mxu0 %v42
    %229 = vmatmul.f32.gmra.mxu0 %v67
    %v230 = vpop.f32.mrf.mxu0
    %v231 = vadd.f32 %v60, %v230
    %232 = vmatmul.f32.gmra.mxu0 %v70
    %v233 = vpop.f32.mrf.mxu0
    %v234 = vadd.f32 %v60, %v233
    %235 = vmatmul.f32.gmra.mxu0 %v73
    %v236 = vpop.f32.mrf.mxu0
    %v237 = vadd.f32 %v60, %v236
    %238 = vmatmul.f32.gmra.mxu0 %v76
    %v239 = vpop.f32.mrf.mxu0
    %v240 = vadd.f32 %v60, %v239
    %241 = vmatmul.f32.gmra.mxu0 %v79
    %v242 = vpop.f32.mrf.mxu0
    %v243 = vadd.f32 %v60, %v242
    %244 = vmatmul.f32.gmra.mxu0 %v82
    %v245 = vpop.f32.mrf.mxu0
    %v246 = vadd.f32 %v60, %v245
    %247 = vmatmul.f32.gmra.mxu0 %v85
    %v248 = vpop.f32.mrf.mxu0
    %v249 = vadd.f32 %v60, %v248
    %250 = vmatmul.f32.gmra.mxu0 %v88
    %v251 = vpop.f32.mrf.mxu0
    %v252 = vadd.f32 %v60, %v251
    %253 = vdwg.mxu0
    %254 = vst [vmem:[#allocation5] sm:$0xff] %v108
    %255 = vst [vmem:[#allocation5 + $0x8] sm:$0xff] %v149
    %256 = vst [vmem:[#allocation5 + $0x10] sm:$0xff] %v190
    %257 = vst [vmem:[#allocation5 + $0x18] sm:$0xff] %v231
    %258 = vst [vmem:[#allocation5 + $0x20] sm:$0xff] %v111
    %259 = vst [vmem:[#allocation5 + $0x28] sm:$0xff] %v152
    %260 = vst [vmem:[#allocation5 + $0x30] sm:$0xff] %v193
    %261 = vst [vmem:[#allocation5 + $0x38] sm:$0xff] %v234
    %262 = vst [vmem:[#allocation5 + $0x40] sm:$0xff] %v114
    %263 = vst [vmem:[#allocation5 + $0x48] sm:$0xff] %v155
    %264 = vst [vmem:[#allocation5 + $0x50] sm:$0xff] %v196
    %265 = vst [vmem:[#allocation5 + $0x58] sm:$0xff] %v237
    %266 = vst [vmem:[#allocation5 + $0x60] sm:$0xff] %v117
    %267 = vst [vmem:[#allocation5 + $0x68] sm:$0xff] %v158
    %268 = vst [vmem:[#allocation5 + $0x70] sm:$0xff] %v199
    %269 = vst [vmem:[#allocation5 + $0x78] sm:$0xff] %v240
    %270 = vst [vmem:[#allocation5 + $0x80] sm:$0xff] %v120
    %271 = vst [vmem:[#allocation5 + $0x88] sm:$0xff] %v161
    %272 = vst [vmem:[#allocation5 + $0x90] sm:$0xff] %v202
    %273 = vst [vmem:[#allocation5 + $0x98] sm:$0xff] %v243
    %274 = vst [vmem:[#allocation5 + $0xa0] sm:$0xff] %v123
    %275 = vst [vmem:[#allocation5 + $0xa8] sm:$0xff] %v164
    %276 = vst [vmem:[#allocation5 + $0xb0] sm:$0xff] %v205
    %277 = vst [vmem:[#allocation5 + $0xb8] sm:$0xff] %v246
    %278 = vst [vmem:[#allocation5 + $0xc0] sm:$0xff] %v126
    %279 = vst [vmem:[#allocation5 + $0xc8] sm:$0xff] %v167
    %280 = vst [vmem:[#allocation5 + $0xd0] sm:$0xff] %v208
    %281 = vst [vmem:[#allocation5 + $0xd8] sm:$0xff] %v249
    %282 = vst [vmem:[#allocation5 + $0xe0] sm:$0xff] %v129
    %283 = vst [vmem:[#allocation5 + $0xe8] sm:$0xff] %v170
    %284 = vst [vmem:[#allocation5 + $0xf0] sm:$0xff] %v211
    %285 = vst [vmem:[#allocation5 + $0xf8] sm:$0xff] %v252
    // Predicated region
    $region18: #{tpu_custom_call.1} parent=1 // pred_check
      _
    $region19: #{tpu_custom_call.1} parent=1 // pred_check_branch
      %287 = sbr.rel (0) target = $region21
    $region20: #{tpu_custom_call.1} parent=1 // pred_region
      %289 = vsyncadd [#allocation4], 0
      %s290 = sshll.u32 [#allocation5], 4
      %s291 = int_to_ptr.vmem [resolvable:$true] %s290
      %s292 = sshll.u32 %s3, 4
      %s293 = int_to_ptr.hbm [resolvable:$true] %s292
      %298 = dma.vmem_to_hbm [thread:$0]  %s291, 4096, %s293, [#allocation4], 512, 512, 32
    $region21: #{tpu_custom_call.1} parent=1 // pred_fallthru
      _
    // Predicated region
    $region22: #{tpu_custom_call.1} parent=1 // pred_check
      _
    $region23: #{tpu_custom_call.1} parent=1 // pred_check_branch
      %300 = sbr.rel (0) target = $region25
    $region24: #{tpu_custom_call.1} parent=1 // pred_region
      %302 = dma.done [#allocation4], 4096
    $region25: #{tpu_custom_call.1} parent=1 // pred_fallthru
      _
    %303 = vsyncpa [#allocation3], 1
    %304 = vsyncpa [#allocation4], 1

</llo_original>
